<compile_context>
chip_gen: v5e
topology: v5e:2x2
jax: 0.10.0
libtpu: 0.0.40
codegen_flags: <defaults>
</compile_context>

<pallas_src>
import functools

import jax
import jax.numpy as jnp
from jax.experimental import pallas as pl
from jax.experimental.pallas import tpu as pltpu


def _gin_agg_kernel(m_ref, x_ref, o_ref):
    """GIN aggregation for one lane tile.

    rows  = (group, node)           -> m_ref is the fused aggregation operator
    lanes = (batch, channel, feat)  -> x_ref / o_ref lane tile
    One bf16 MXU matmul, f32 accumulation, single unmasked full-tile store.
    """
    o_ref[...] = jnp.dot(m_ref[...], x_ref[...],
                         preferred_element_type=jnp.float32).astype(o_ref.dtype)


def _lane_tiling(rows, lanes):
    """Pick lane-tile width, grid length and vmem limit from real VMEM capacity."""
    bf16 = 2
    try:
        vmem_cap = int(pltpu.get_tpu_info().vmem_capacity_bytes)
    except Exception:                               # not on TPU / older runtime
        vmem_cap = 128 * 1024 * 1024
    dual_core = vmem_cap <= 64 * 1024 * 1024        # 64 MiB/TC => v7x-class, 2 TCs/chip
    budget = (24 if dual_core else 80) * 1024 * 1024        # target working set
    fixed = 2 * rows * rows * bf16                  # operator M (double-buffered)
    per_lane = 2 * (rows + rows) * bf16             # x block + out block, double-buffered
    cap = max(128, (budget - fixed) // per_lane)
    if dual_core and lanes >= 256:
        # keep >= 2 grid steps only where 2 TensorCores exist (megacore sharding);
        # on single-TC v5e/v6e a forced split would just double per-step overhead.
        cap = min(cap, max(128, (pl.cdiv(lanes, 2) // 128) * 128))
    tile = lanes if lanes <= cap else max(128, (cap // 128) * 128)
    steps = pl.cdiv(lanes, tile)
    work = fixed + tile * per_lane
    limit_cap = (48 if dual_core else 100) * 1024 * 1024    # headroom on 64 MiB parts
    vmem_limit = int(min(limit_cap, max(32 * 1024 * 1024, 2 * work)))
    return tile, steps, vmem_limit


@functools.partial(jax.jit, static_argnames=("add_loop",))
def dense_gin_conv2d(x, adj, weight, eps, add_loop=True):
    """x: [B, C, N, F]  adj: [G, N, N]  weight: [G, Cout, C]  eps: scalar -> [B, Cout, N, F]."""
    B, C, N, F = x.shape
    G = adj.shape[0]
    Cout = weight.shape[1]
    Fg = F // G
    R = G * N                 # kernel rows : (group, node)
    L = B * C * Fg            # kernel lanes: (batch, channel, feat)

    # ---- one-time XLA preprocessing (shared across the whole batch) --------
    # symmetric normalization D^-1/2 A D^-1/2 with degree clamped at 1
    dis = jnp.maximum(adj.sum(-1), 1.0) ** -0.5                        # [G, N]
    adj_n = dis[:, :, None] * adj * dis[:, None, :]                    # [G, N, N]

    # Fuse normalization + group-(g-1) carry + (1+eps) self-loop into ONE
    # operator shared by every batch element: no per-batch work in XLA, no
    # cross-group VMEM carry in the kernel, no kron(W, I_Fg) weight blow-up.
    blockdiag = jnp.einsum("gnm,gh->gnhm", adj_n,
                           jnp.eye(G, dtype=adj_n.dtype)).reshape(R, R)
    carry = jnp.kron(jnp.eye(G, k=-1, dtype=adj_n.dtype),
                     jnp.eye(N, dtype=adj_n.dtype))
    m = blockdiag + carry
    if add_loop:
        m = m + (1.0 + eps) * jnp.eye(R, dtype=adj_n.dtype)
    m = m.astype(jnp.bfloat16)                       # bf16 operand streaming

    # x: [B, C, N, F] -> rows (g, n), lanes (b, c, f); bf16 streaming.
    # allow_input_fusion below lets XLA fuse this relayout into the pallas input.
    xr = (x.reshape(B, C, N, G, Fg)
           .transpose(3, 2, 0, 1, 4)
           .reshape(R, L)).astype(jnp.bfloat16)

    tile, steps, vmem_limit = _lane_tiling(R, L)

    # NOTE: the fused operator M is assumed to fit VMEM (G*N up to a few
    # thousand rows in bf16, far beyond TodyNet node counts); row-tiling M
    # would be the next step for much larger graphs.
    h = pl.pallas_call(
        _gin_agg_kernel,
        out_shape=jax.ShapeDtypeStruct((R, L), jnp.bfloat16),
        grid=(steps,),
        in_specs=[
            pl.BlockSpec((R, R), lambda l: (0, 0)),       # constant index -> DMA'd once
            pl.BlockSpec((R, tile), lambda l: (0, l)),    # lane-dense x tile
        ],
        out_specs=pl.BlockSpec((R, tile), lambda l: (0, l)),
        compiler_params=pltpu.CompilerParams(
            dimension_semantics=("parallel",),            # megacore-shardable
            vmem_limit_bytes=vmem_limit,
            allow_input_fusion=[True, True],
        ),
    )(m, xr)                                              # [G*N, B*C*Fg] bf16

    # ---- grouped 1x1 channel mix (Group_Linear), hoisted to an XLA einsum ----
    # Runs AFTER the aggregation (the g-1 carry crosses groups, so the
    # group-dependent mix does not commute with it).
    hr = h.reshape(G, N, B, C, Fg).astype(jnp.float32)
    y = jnp.einsum("goc,gnbcf->bongf", weight.astype(jnp.float32), hr)
    return y.reshape(B, Cout, N, G * Fg)                  # [B, Cout, N, F]


def reference(x, adj, weight, eps, add_loop=True):
    """Pure-JAX transcription of the PyTorch forward (sanity check)."""
    B, C, N, F = x.shape
    G = adj.shape[0]
    Cout = weight.shape[1]
    Fg = F // G
    deg_inv_sqrt = jnp.maximum(adj.sum(-1), 1.0) ** -0.5                  # [G, N]
    adj_n = deg_inv_sqrt[..., :, None] * adj * deg_inv_sqrt[..., None, :]
    xr = x.reshape(B, C, N, G, Fg).transpose(0, 1, 3, 2, 4)               # [B, C, G, N, Fg]
    out = jnp.einsum("gnm,bcgmf->bcgnf", adj_n, xr)
    out = out.at[:, :, 1:].add(xr[:, :, :-1])
    if add_loop:
        out = (1.0 + eps) * xr + out
    y = jnp.einsum("goc,bcgnf->bognf", weight, out)                       # [B, Cout, G, N, Fg]
    return y.transpose(0, 1, 3, 2, 4).reshape(B, Cout, N, F)


if __name__ == "__main__":
    B, C, Cout, N, F, G = 2, 4, 8, 16, 16, 2
    key = jax.random.PRNGKey(0)
    kx, ka, kw = jax.random.split(key, 3)

    x = jax.random.normal(kx, (B, C, N, F), jnp.float32)
    adj = jax.random.uniform(ka, (G, N, N), jnp.float32)                  # non-negative adjacency

    # Deterministic init matching nn.Conv2d(C*G, Cout*G, 1, groups=G, bias=False):
    # kaiming_uniform(a=sqrt(5)) -> U(-1/sqrt(fan_in), 1/sqrt(fan_in)), fan_in = C.
    bound = 1.0 / (C ** 0.5)
    weight = jax.random.uniform(kw, (G, Cout, C), jnp.float32, -bound, bound)
    eps = jnp.float32(0.1)                                                # trainable eps parameter

    out = dense_gin_conv2d(x, adj, weight, eps, add_loop=True)
    out = jax.block_until_ready(out)

    ref = reference(x, adj, weight, eps, add_loop=True)
    assert out.shape == (B, Cout, N, F), out.shape
    max_err = float(jnp.max(jnp.abs(out - ref)))
    # bf16 operand/output streaming -> slightly looser atol than the all-f32 v1
    assert jnp.allclose(out, ref, atol=3e-2, rtol=2e-2), f"max abs err {max_err}"

    print("KERNEL_OK")
</pallas_src>

<mosaic_0001>
module attributes {stable_mosaic.version = 11 : i64} {
  func.func @_gin_agg_kernel(%arg0: i32, %arg1: memref<32x32xbf16, #tpu.memory_space<vmem>>, %arg2: memref<32x64xbf16, #tpu.memory_space<vmem>>, %arg3: memref<32x64xbf16, #tpu.memory_space<vmem>>) attributes {dimension_semantics = [#tpu.dimension_semantics<parallel>], iteration_bounds = array<i64: 1>, scalar_prefetch = 0 : i64, scratch_operands = 0 : i64, tpu.core_type = #tpu.core_type<tc>, window_params = [{pipeline_mode = #tpu.pipeline_mode<synchronous>, transform_indices = @transform_0, window_bounds = array<i64: 32, 32>}, {transform_indices = @transform_1, window_bounds = array<i64: 32, 64>}, {transform_indices = @transform_2, window_bounds = array<i64: 32, 64>}]} {
    %c0 = arith.constant 0 : index
    %c0_0 = arith.constant 0 : index
    %0 = vector.load %arg1[%c0, %c0_0] : memref<32x32xbf16, #tpu.memory_space<vmem>>, vector<32x32xbf16>
    %c0_1 = arith.constant 0 : index
    %c0_2 = arith.constant 0 : index
    %1 = vector.load %arg2[%c0_1, %c0_2] : memref<32x64xbf16, #tpu.memory_space<vmem>>, vector<32x64xbf16>
    %cst = arith.constant dense<0.000000e+00> : vector<32x64xf32>
    %2 = tpu.matmul %0, %1, %cst {dimension_numbers = #tpu.dot_dimension_numbers<[1], [0], [0], [1], [0, 0, 1, 1], [], []>} : vector<32x32xbf16>, vector<32x64xbf16>, vector<32x64xf32> -> vector<32x64xf32>
    %3 = arith.truncf %2 : vector<32x64xf32> to vector<32x64xbf16>
    %c0_3 = arith.constant 0 : index
    %c0_4 = arith.constant 0 : index
    %4 = vector.load %arg3[%c0_3, %c0_4] : memref<32x64xbf16, #tpu.memory_space<vmem>>, vector<32x64xbf16>
    tpu.vector_store %arg3[%c0_3, %c0_4], %3 {strides = array<i32>} : memref<32x64xbf16, #tpu.memory_space<vmem>>, vector<32x64xbf16>,
    return
  }
  func.func @transform_0(%arg0: i32) -> (i32, i32) {
    %c0_i32 = arith.constant 0 : i32
    %c0_i32_0 = arith.constant 0 : i32
    %c0_i32_1 = arith.constant 0 : i32
    return %c0_i32, %c0_i32_0 : i32, i32
  }
  func.func @transform_1(%arg0: i32) -> (i32, i32) {
    %c0_i32 = arith.constant 0 : i32
    %c0_i32_0 = arith.constant 0 : i32
    return %c0_i32, %arg0 : i32, i32
  }
  func.func @transform_2(%arg0: i32) -> (i32, i32) {
    %c0_i32 = arith.constant 0 : i32
    %c0_i32_0 = arith.constant 0 : i32
    return %c0_i32, %arg0 : i32, i32
  }
}

</mosaic_0001>

<llo_original>
// kernel: dense_gin_conv2d.2
$region0: #{dense_gin_conv2d.2}
  #allocation0 [shape = 'u32[]', space=smem, size = 0x4, offset = 0x4, fixed_abs, tag = 'smem constant byte address 0x4 - core index']
  #allocation1 [shape = 'u32[72,128]{1,0:T(1,128)}', space=vmem, size = 0x9000, scoped, tag = 'internal scratch']
  %s0 = inlined_call_operand.vmem [shape: bf16[32,64], index: 0, kind: input, shape index: {}]
  %s1 = inlined_call_operand.vmem [shape: f32[32,32], index: 1, kind: input, shape index: {}]
  %s2 = inlined_call_operand.<no memory space> [shape: f32[], index: 2, kind: input, shape index: {}]
  %s3 = inlined_call_operand.<no memory space> [shape: f32[], index: 3, kind: input, shape index: {}]
  %s4 = inlined_call_operand.vmem [shape: bf16[32,64], index: 4, kind: output, shape index: {}]
  %s5 = sld [smem:[#allocation0]]
  $region18: #{dense_gin_conv2d.2} parent=0
    _
  %s7 = ssub.s32 1, %s5
  %s8 = scalar_select 0, %s7, %s5
  %v9 = vstv %s2
  %v10 = vstv %s3
  $region1: #{dense_gin_conv2d.2} parent=0
    #allocation2 [shape = 'u8[8192]{0}', space=vmem, size = 0x2000, dematerialized = true, scoped, tag = 'FusionAdapter Buffer %fusion.3 = bf16[32,32]{1,0:T(8,128)(2,1)} fusion(%param_1.19, %param_2.13, %param_3.11), kind=kLoop, calls=%fused_computation.6.clone.clone, metadata={op_name="jit(dense_gin_conv2d)/convert_element_type" stack_frame_id=22}']
    // Predicated region
    $region2: #{dense_gin_conv2d.2} parent=1 // pred_check
      _
    $region3: #{dense_gin_conv2d.2} parent=1 // pred_check_branch
      %12 = sbr.rel (0) target = $region5
    $region4: #{dense_gin_conv2d.2} parent=1 // pred_region
      _
    $region5: #{dense_gin_conv2d.2} parent=1 // pred_fallthru
      _
    // Predicated region
    $region6: #{dense_gin_conv2d.2} parent=1 // pred_check
      _
    $region7: #{dense_gin_conv2d.2} parent=1 // pred_check_branch
      %14 = sbr.rel (0) target = $region9
    $region8: #{dense_gin_conv2d.2} parent=1 // pred_region
      _
    $region9: #{dense_gin_conv2d.2} parent=1 // pred_fallthru
      _
    %v15 = vld [vmem:[%s1] sm:$0xff]
    %v16 = vlaneseq
    %v17 = vshrl.u32 %v16, 7
    %v20 = vlaneseq
    %v21 = vand.u32 %v20, 127
    %24 = xla_tuple %v17, %v21
    %25 = xla_tuple %24
    %vm26 = vcmp.eq.s32.totalorder %v17, %v21
    %v27 = vsel %vm26, 1, 0
    %28 = xla_tuple %v27
    %29 = xla_tuple %v27, %v10, %v9
    %30 = xla_tuple %29
    %v31 = vsel %vm26, %v10, %v9
    %32 = xla_tuple %v31
    %33 = xla_tuple %v15, %v31
    %34 = xla_tuple %33
    %v35 = vadd.f32 %v15, %v31
    %36 = xla_tuple %v35
    %37 = xla_tuple %v35
    %38 = xla_tuple %37
    %39 = xla_tuple %v35
    %v40 = vpack.c.bf16 0.0, %v35
    %s42 = ssub.s32 16, 1
    %43 = vst [vmem:[#allocation2] sm:%s42] %v40
    %s44 = scalar_lea.vmem %s1, 8
    %v45 = vld [vmem:[%s44] sm:$0xff]
    %v46 = vlaneseq
    %v47 = vshrl.u32 %v46, 7
    %v49 = vadd.s32 %v47, 8
    %v50 = vlaneseq
    %v51 = vand.u32 %v50, 127
    %54 = xla_tuple %v49, %v51
    %55 = xla_tuple %54
    %vm56 = vcmp.eq.s32.totalorder %v49, %v51
    %v57 = vsel %vm56, 1, 0
    %58 = xla_tuple %v57
    %59 = xla_tuple %v57, %v10, %v9
    %60 = xla_tuple %59
    %v61 = vsel %vm56, %v10, %v9
    %62 = xla_tuple %v61
    %63 = xla_tuple %v45, %v61
    %64 = xla_tuple %63
    %v65 = vadd.f32 %v45, %v61
    %66 = xla_tuple %v65
    %67 = xla_tuple %v65
    %68 = xla_tuple %67
    %69 = xla_tuple %v65
    %s70 = scalar_lea.vmem [#allocation2], 4
    %v71 = vpack.c.bf16 0.0, %v65
    %s73 = ssub.s32 16, 1
    %74 = vst [vmem:[%s70] sm:%s73] %v71
    %s75 = scalar_lea.vmem %s1, 16
    %v76 = vld [vmem:[%s75] sm:$0xff]
    %v77 = vlaneseq
    %v78 = vshrl.u32 %v77, 7
    %v80 = vadd.s32 %v78, 16
    %v81 = vlaneseq
    %v82 = vand.u32 %v81, 127
    %85 = xla_tuple %v80, %v82
    %86 = xla_tuple %85
    %vm87 = vcmp.eq.s32.totalorder %v80, %v82
    %v88 = vsel %vm87, 1, 0
    %89 = xla_tuple %v88
    %90 = xla_tuple %v88, %v10, %v9
    %91 = xla_tuple %90
    %v92 = vsel %vm87, %v10, %v9
    %93 = xla_tuple %v92
    %94 = xla_tuple %v76, %v92
    %95 = xla_tuple %94
    %v96 = vadd.f32 %v76, %v92
    %97 = xla_tuple %v96
    %98 = xla_tuple %v96
    %99 = xla_tuple %98
    %100 = xla_tuple %v96
    %s101 = scalar_lea.vmem [#allocation2], 8
    %v102 = vpack.c.bf16 0.0, %v96
    %s104 = ssub.s32 16, 1
    %105 = vst [vmem:[%s101] sm:%s104] %v102
    %s106 = scalar_lea.vmem %s1, 24
    %v107 = vld [vmem:[%s106] sm:$0xff]
    %v108 = vlaneseq
    %v109 = vshrl.u32 %v108, 7
    %v111 = vadd.s32 %v109, 24
    %v112 = vlaneseq
    %v113 = vand.u32 %v112, 127
    %116 = xla_tuple %v111, %v113
    %117 = xla_tuple %116
    %vm118 = vcmp.eq.s32.totalorder %v111, %v113
    %v119 = vsel %vm118, 1, 0
    %120 = xla_tuple %v119
    %121 = xla_tuple %v119, %v10, %v9
    %122 = xla_tuple %121
    %v123 = vsel %vm118, %v10, %v9
    %124 = xla_tuple %v123
    %125 = xla_tuple %v107, %v123
    %126 = xla_tuple %125
    %v127 = vadd.f32 %v107, %v123
    %128 = xla_tuple %v127
    %129 = xla_tuple %v127
    %130 = xla_tuple %129
    %131 = xla_tuple %v127
    %s132 = scalar_lea.vmem [#allocation2], 12
    %v133 = vpack.c.bf16 0.0, %v127
    %s135 = ssub.s32 16, 1
    %136 = vst [vmem:[%s132] sm:%s135] %v133
    %v138 = vld [vmem:[#allocation2] sm:$0xf]
    %v139 = vld [vmem:[#allocation2 + $0x4] sm:$0xf]
    %v140 = vld [vmem:[#allocation2 + $0x8] sm:$0xf]
    %v141 = vld [vmem:[#allocation2 + $0xc] sm:$0xf]
    %v142 = vld [vmem:[%s0] sm:$0xf]
    %v143 = vld [vmem:[%s0 + $0x4] sm:$0xf]
    %v144 = vld [vmem:[%s0 + $0x8] sm:$0xf]
    %v145 = vld [vmem:[%s0 + $0xc] sm:$0xf]
    %v150 = vunpack.c.l.b16 %v138
    %v151 = vunpack.c.l.b16 %v139
    %v152 = vunpack.c.l.b16 %v140
    %v153 = vunpack.c.l.b16 %v141
    %v154 = vpack.c.b16 %v151, %v150
    %v155 = vpack.c.b16 %v153, %v152
    %v160 = vunpack.c.l.b16 %v142
    %v161 = vunpack.c.l.b16 %v143
    %v162 = vunpack.c.l.b16 %v144
    %v163 = vunpack.c.l.b16 %v145
    %v164 = vpack.c.b16 %v161, %v160
    %v165 = vpack.c.b16 %v163, %v162
    %vm168 = vcmask 261120
    %v170 = vsel %vm168, %v154, 0
    %v173 = vsel %vm168, %v155, 0
    %175 = vmatpush.bf16.msra.mxu0 0
    %176 = vmatpush.bf16.msra.mxu0 0
    %177 = vmatpush.bf16.msra.mxu0 0
    %178 = vmatpush.bf16.msra.mxu0 0
    %179 = vmatpush.bf16.msra.mxu0 0
    %180 = vmatpush.bf16.msra.mxu0 0
    %181 = vmatpush.bf16.msra.mxu0 %v165
    %182 = vmatpush.bf16.msra.mxu0 %v164
    %183 = vmatmul.bf16.gmra.mxu0 %v170
    %v184 = vpop.f32.mrf.mxu0
    %v185 = vadd.f32 0.0, %v184
    %v186 = vpop.f32.mrf.mxu0
    %v187 = vadd.f32 0.0, %v186
    %188 = vmatmul.bf16.gmra.mxu0 %v173
    %v189 = vpop.f32.mrf.mxu0
    %v190 = vadd.f32 0.0, %v189
    %v191 = vpop.f32.mrf.mxu0
    %v192 = vadd.f32 0.0, %v191
    %193 = vdwg.mxu0
    %v194 = vpack.c.bf16 %v185, %v185
    %v195 = vpack.c.bf16 %v187, %v187
    %v196 = vpack.c.bf16 %v190, %v190
    %v197 = vpack.c.bf16 %v192, %v192
    %vm198 = vcmask 519168
    %199 = vst.msk [vmem:[%s4] sm:$0xf] %vm198, %v194
    %200 = vst.msk [vmem:[%s4 + $0x4] sm:$0xf] %vm198, %v195
    %201 = vst.msk [vmem:[%s4 + $0x8] sm:$0xf] %vm198, %v196
    %202 = vst.msk [vmem:[%s4 + $0xc] sm:$0xf] %vm198, %v197
    // Predicated region
    $region10: #{dense_gin_conv2d.2} parent=1 // pred_check
      _
    $region11: #{dense_gin_conv2d.2} parent=1 // pred_check_branch
      %204 = sbr.rel (0) target = $region13
    $region12: #{dense_gin_conv2d.2} parent=1 // pred_region
      _
    $region13: #{dense_gin_conv2d.2} parent=1 // pred_fallthru
      _
    // Predicated region
    $region14: #{dense_gin_conv2d.2} parent=1 // pred_check
      _
    $region15: #{dense_gin_conv2d.2} parent=1 // pred_check_branch
      %206 = sbr.rel (0) target = $region17
    $region16: #{dense_gin_conv2d.2} parent=1 // pred_region
      _
    $region17: #{dense_gin_conv2d.2} parent=1 // pred_fallthru
      _

</llo_original>
